<compile_context>
chip_gen: v7x
topology: tpu7x:2x2x1
jax: 0.10.0
libtpu: 0.0.40
codegen_flags: <defaults>
</compile_context>

<pallas_src>
import functools
import math
import numpy as np
import jax
import jax.numpy as jnp
from jax.experimental import pallas as pl
from jax.experimental.pallas import tpu as pltpu

patch_size = 7
_LANE = 128        # padded lane width of each tap block / of the output
_MAX_GROUP = 16    # batches fused per grid step (bounds kron'd constants)


def bsm(n, d):
    a = [[0] * n for _ in range(n)]
    p = 0
    q = n - 1
    w = int((n + 1) / 2)
    t = 0
    while p < d:
        for i in range(p, q):
            a[p][i] = t
        for i in range(p, q):
            a[i][q] = t
        for i in range(q, p, -1):
            a[q][i] = t
        for i in range(q, p, -1):
            a[i][p] = t
        p += 1
        q -= 1
    while p == d or (p > d and p < q):
        for i in range(p, q):
            a[p][i] = 1
        for i in range(p, q):
            a[i][q] = 1
        for i in range(q, p, -1):
            a[q][i] = 1
        for i in range(q, p, -1):
            a[i][p] = 1
        a[w - 1][w - 1] = 1
        p += 1
        q -= 1
    return np.array(a)


# ---------------------------------------------------------------------------
# Host-side constant builders (run once per module configuration, NOT per call)
# ---------------------------------------------------------------------------
def _flat_shift(H, W, dh, dw):
    """S with (row @ S)[h*W+w] = row[(h+dh)*W + (w+dw)] if in range else 0."""
    HW = H * W
    S = np.zeros((HW, HW), dtype=np.float32)
    for p in range(HW):
        h, w = divmod(p, W)
        hi, wi = h + dh, w + dw
        if 0 <= hi < H and 0 <= wi < W:
            S[hi * W + wi, p] = 1.0
    return S


@functools.lru_cache(maxsize=None)
def _structural_consts(H, W, kh, kw, d):
    """Shift matrix with fused avg-pool columns, bias lane pattern, bsm mask."""
    assert H == W, "the PyTorch module's bsm mask assumes square patches"
    HW = H * W
    assert HW + 2 <= _LANE, "spatial size must fit (with 2 avg lanes) in one 128-lane tile"
    mask = bsm(W, d).astype(np.float32)
    mask_flat = mask.reshape(HW)
    ph, pw = (kh - 1) // 2, (kw - 1) // 2
    offsets = [(i - ph, 0) for i in range(kh)] + [(0, j - pw) for j in range(kw)]
    blocks = []
    for dh, dw in offsets:
        S_t = _flat_shift(H, W, dh, dw)
        blk = np.zeros((HW, _LANE), dtype=np.float32)
        blk[:, :HW] = S_t                               # shifted map (lanes 0..HW-1)
        blk[:, HW] = S_t.sum(axis=1) / HW               # plain mean of the shifted map
        blk[:, HW + 1] = (S_t @ mask_flat) / HW         # bsm-masked mean of the shifted map
        blocks.append(blk)
    S_aug = np.concatenate(blocks, axis=1)              # (HW, ntaps*128)
    # How a per-row constant bias spreads over [data lanes | plain-avg | masked-avg | pad]
    pattern = np.zeros((_LANE,), dtype=np.float32)
    pattern[:HW] = 1.0
    pattern[HW] = 1.0
    pattern[HW + 1] = float(mask_flat.mean())
    return S_aug, pattern, mask


def _band(taps, C, pad):
    """M s.t. (row @ M)[c] == sum_j taps[j] * row_zero_padded[c - pad + j]."""
    taps = np.asarray(taps, dtype=np.float32)
    k = taps.shape[0]
    i = np.arange(C)[:, None]
    c = np.arange(C)[None, :]
    idx = i - c + pad
    valid = (idx >= 0) & (idx < k)
    return np.where(valid, taps[np.clip(idx, 0, k - 1)], 0.0).astype(np.float32)


def _gate_consts(w_plain, b_plain, w_mask, b_mask, C, pad, G):
    """Fold NCAM2D's Conv2d(1,1,(2,k)) over [avg, reversed(avg)] into one matmul.

    Returns ghcat (G*C, 2*G*C) = [kron(I_G, A^T) | kron(I_G, B^T)] and the
    (G*C, 2) broadcast biases [b_plain, b_mask].
    """
    A = _band(w_plain[0], C, pad) + np.flipud(_band(w_plain[1], C, pad))
    Bm = _band(w_mask[0], C, pad) + np.flipud(_band(w_mask[1], C, pad))
    eye = np.eye(G, dtype=np.float32)
    ghcat = np.concatenate([np.kron(eye, A.T), np.kron(eye, Bm.T)], axis=1)
    gb = np.tile(np.array([[float(b_plain), float(b_mask)]], np.float32), (G * C, 1))
    return ghcat, gb


# ---------------------------------------------------------------------------
# Pallas kernel: one batch-group per grid step, 4 serial MXU matmuls total
# ---------------------------------------------------------------------------
def _le_dsc2d_kernel(x_ref, s_ref, p1_ref, p2_ref, o_ref, *, cin, cout, ntaps, hw):
    lane = _LANE

    def gate(y, ghcat, gb):
        # Plain / masked avg-pools already ride along on lanes hw, hw+1.
        avg = y[:, hw:hw + 2]                                             # (rows, 2)
        col = jax.lax.broadcasted_iota(jnp.int32, avg.shape, 1)
        blk = jnp.concatenate([jnp.where(col == 0, avg, 0.0),
                               jnp.where(col == 1, avg, 0.0)], axis=0)    # (2*rows, 2)
        c = jnp.dot(ghcat, blk, preferred_element_type=jnp.float32) + gb  # both conv paths
        s = jax.nn.sigmoid(c)
        at = jax.nn.sigmoid((s[:, 0:1] * s[:, 1:2] - 0.2) * 2.0)          # (rows, 1)
        return y * at                                                     # lane broadcast

    # --- depthwise (kh,1) + (1,kw): ONE bf16 MXU matmul over all taps ---------
    shifted = jnp.dot(x_ref[...], s_ref[...],
                      preferred_element_type=jnp.float32)                 # (cin, ntaps*128)

    p1 = p1_ref[...]                                                      # packed nin consts
    dwb_full = p1[:, :lane]                                               # bias * lane pattern
    g1 = p1[:, lane:lane + 2 * cin]
    wt = p1[:, lane + 2 * cin:lane + 2 * cin + ntaps]                     # read once
    gb1 = p1[:, lane + 2 * cin + ntaps:lane + 2 * cin + ntaps + 2]

    out3 = dwb_full
    for t in range(ntaps):                       # static unroll; 128-aligned tap slices
        out3 = out3 + wt[:, t:t + 1] * shifted[:, t * lane:(t + 1) * lane]

    y1 = gate(out3, g1, gb1)                     # NCAM2D(nin)

    p2 = p2_ref[...]                                                      # packed nout consts
    pwb_full = p2[:, :lane]
    g2 = p2[:, lane:lane + 2 * cout]
    wpb = p2[:, lane + 2 * cout:lane + 2 * cout + cin]
    gb2 = p2[:, lane + 2 * cout + cin:lane + 2 * cout + cin + 2]

    pw = jnp.dot(wpb, y1, preferred_element_type=jnp.float32) + pwb_full  # 1x1 pointwise
    o_ref[...] = gate(pw, g2, gb2).astype(o_ref.dtype)                    # NCAM2D(nout)


# ---------------------------------------------------------------------------
# Builder: fold all weights/constants once, return a jitted forward(x)
# ---------------------------------------------------------------------------
def build_le_dsc2d(wdh, bdh, wdw, bdw, wp, bp,
                   w11, b11, w12, b12, w21, b21, w22, b22,
                   *, B, nin, nout, H, W, pad1, pad2):
    HW = H * W
    kh, kw = int(wdh.shape[1]), int(wdw.shape[1])
    ntaps = kh + kw
    d = (patch_size - 1) // 2 - 1

    # Batch grouping: rows per step = G*nin / G*nout; grid over groups ("parallel").
    G = B if B <= _MAX_GROUP else _MAX_GROUP
    num_groups = -(-B // G)
    B_pad = num_groups * G
    cin, cout = G * nin, G * nout

    S_aug_np, pattern, _ = _structural_consts(H, W, kh, kw, d)

    wdh_np, bdh_np = np.asarray(wdh, np.float32), np.asarray(bdh, np.float32)
    wdw_np, bdw_np = np.asarray(wdw, np.float32), np.asarray(bdw, np.float32)
    wp_np, bp_np = np.asarray(wp, np.float32), np.asarray(bp, np.float32)

    ghcat1, gb1 = _gate_consts(np.asarray(w11, np.float32), np.asarray(b11),
                               np.asarray(w12, np.float32), np.asarray(b12), nin, pad1, G)
    ghcat2, gb2 = _gate_consts(np.asarray(w21, np.float32), np.asarray(b21),
                               np.asarray(w22, np.float32), np.asarray(b22), nout, pad2, G)

    # Packed nin-side constants: [bias*pattern (128) | gate matrix | tap weights | gate bias]
    wt_rows = np.tile(np.concatenate([wdh_np, wdw_np], axis=1), (G, 1))
    dwb_full = np.tile((bdh_np + bdw_np)[:, None], (G, 1)) * pattern[None, :]
    P1_np = np.concatenate([dwb_full, ghcat1, wt_rows, gb1], axis=1)       # (cin, 128+2cin+ntaps+2)

    # Packed nout-side constants: [bias*pattern (128) | gate matrix | pointwise | gate bias]
    wp_blk = np.kron(np.eye(G, dtype=np.float32), wp_np)                   # bounded by _MAX_GROUP
    pwb_full = np.tile(bp_np[:, None], (G, 1)) * pattern[None, :]
    P2_np = np.concatenate([pwb_full, ghcat2, wp_blk, gb2], axis=1)        # (cout, 128+2cout+cin+2)

    S_aug = jnp.asarray(S_aug_np, dtype=jnp.bfloat16)   # 0/1 and 1/HW entries: bf16-safe
    P1 = jnp.asarray(P1_np, dtype=jnp.float32)
    P2 = jnp.asarray(P2_np, dtype=jnp.float32)

    kernel = functools.partial(_le_dsc2d_kernel, cin=cin, cout=cout, ntaps=ntaps, hw=HW)

    call = pl.pallas_call(
        kernel,
        out_shape=jax.ShapeDtypeStruct((num_groups, cout, _LANE), jnp.float32),
        grid=(num_groups,),
        in_specs=[
            pl.BlockSpec((None, cin, HW), lambda g: (g, 0, 0)),       # x, one group per step
            pl.BlockSpec((HW, ntaps * _LANE), lambda g: (0, 0)),      # shift+avg matrix (resident)
            pl.BlockSpec(P1.shape, lambda g: (0, 0)),                 # packed nin-side consts
            pl.BlockSpec(P2.shape, lambda g: (0, 0)),                 # packed nout-side consts
        ],
        out_specs=pl.BlockSpec((None, cout, _LANE), lambda g: (g, 0, 0)),   # lane-dense store
        compiler_params=pltpu.CompilerParams(dimension_semantics=("parallel",)),
    )

    def fwd(x):
        xg = x.reshape(B, nin, HW)
        if B_pad != B:
            xg = jnp.pad(xg, ((0, B_pad - B), (0, 0), (0, 0)))
        xg = xg.reshape(num_groups, cin, HW).astype(jnp.bfloat16)
        out = call(xg, S_aug, P1, P2)                      # (num_groups, cout, 128)
        out = out[:, :, :HW].reshape(B_pad, nout, H, W)
        return out[:B] if B_pad != B else out

    return jax.jit(fwd)


# ---------------------------------------------------------------------------
# Pure-JAX reference of the PyTorch LE_DSC2D forward (for verification)
# ---------------------------------------------------------------------------
def reference_forward(x, wdh, bdh, wdw, bdw, wp, bp,
                      w11, b11, w12, b12, w21, b21, w22, b22,
                      pad1, pad2, mask2d):
    B, nin, H, W = x.shape
    kh, kw = wdh.shape[1], wdw.shape[1]
    ph, pw_ = (kh - 1) // 2, (kw - 1) // 2

    xp = jnp.pad(x, ((0, 0), (0, 0), (ph, ph), (0, 0)))
    out1 = bdh[None, :, None, None]
    for i in range(kh):
        out1 = out1 + wdh[:, i][None, :, None, None] * xp[:, :, i:i + H, :]
    xq = jnp.pad(x, ((0, 0), (0, 0), (0, 0), (pw_, pw_)))
    out2 = bdw[None, :, None, None]
    for j in range(kw):
        out2 = out2 + wdw[:, j][None, :, None, None] * xq[:, :, :, j:j + W]
    out3 = out1 + out2

    def ncam2d(y, w_plain, b_plain, w_mask, b_mask, pad):
        C = y.shape[1]
        avg_p = y.mean(axis=(2, 3))
        avg_m = (y * mask2d[None, None]).mean(axis=(2, 3))

        def conv_path(avg, w, b):
            k = w.shape[1]
            rows = jnp.stack([avg, avg[:, ::-1]], axis=1)
            padded = jnp.pad(rows, ((0, 0), (0, 0), (pad, pad)))
            res = jnp.zeros_like(avg)
            for j in range(k):
                res = res + w[0, j] * padded[:, 0, j:j + C] + w[1, j] * padded[:, 1, j:j + C]
            return res + b

        s1 = jax.nn.sigmoid(conv_path(avg_p, w_plain, b_plain))
        s2 = jax.nn.sigmoid(conv_path(avg_m, w_mask, b_mask))
        at = jax.nn.sigmoid((s1 * s2 - 0.2) * 2.0)
        return y * at[:, :, None, None]

    out = ncam2d(out3, w11, b11, w12, b12, pad1)
    out = jnp.einsum('oc,bchw->bohw', wp, out) + bp[None, :, None, None]
    out = ncam2d(out, w21, b21, w22, b22, pad2)
    return out


if __name__ == "__main__":
    B, nin, nout = 2, 4, 8
    H = W = patch_size                       # 7 (module-level constant)
    kh = kw = 3                              # LE_DSC2D kernel_size_h / kernel_size_w

    def ncam_ksize(c):
        gamma, bconst = 2, 3
        k = int(abs((math.log(c, 2) + bconst) / gamma))
        return k if k % 2 else k + 1

    k1 = ncam_ksize(nin)
    pad1 = (k1 - 1) // 2
    k2 = ncam_ksize(nout)
    pad2 = (k2 - 1) // 2
    d = (patch_size - 1) // 2 - 1
    mask2d = jnp.asarray(bsm(W, d), dtype=jnp.float32)

    key = jax.random.PRNGKey(0)
    ks = jax.random.split(key, 16)
    x = jax.random.normal(ks[0], (B, nin, H, W), jnp.float32)
    # The kernel feeds the MXU bf16; quantize the test input once so the f32
    # reference measures kernel error rather than input-rounding error.
    x = x.astype(jnp.bfloat16).astype(jnp.float32)

    wdh = jax.random.normal(ks[1], (nin, kh), jnp.float32) * 0.3
    bdh = jax.random.normal(ks[2], (nin,), jnp.float32) * 0.1
    wdw = jax.random.normal(ks[3], (nin, kw), jnp.float32) * 0.3
    bdw = jax.random.normal(ks[4], (nin,), jnp.float32) * 0.1
    wp = jax.random.normal(ks[5], (nout, nin), jnp.float32) * 0.3
    bp = jax.random.normal(ks[6], (nout,), jnp.float32) * 0.1
    w11 = jax.random.normal(ks[7], (2, k1), jnp.float32) * 0.3    # at1.conv1d  (plain avg)
    b11 = jax.random.normal(ks[8], (), jnp.float32) * 0.1
    w12 = jax.random.normal(ks[9], (2, k1), jnp.float32) * 0.3    # at1.conv1d1 (masked avg)
    b12 = jax.random.normal(ks[10], (), jnp.float32) * 0.1
    w21 = jax.random.normal(ks[11], (2, k2), jnp.float32) * 0.3   # at2.conv1d
    b21 = jax.random.normal(ks[12], (), jnp.float32) * 0.1
    w22 = jax.random.normal(ks[13], (2, k2), jnp.float32) * 0.3   # at2.conv1d1
    b22 = jax.random.normal(ks[14], (), jnp.float32) * 0.1

    # Build once (all constants folded here, outside the per-call path), call many times.
    forward = build_le_dsc2d(wdh, bdh, wdw, bdw, wp, bp,
                             w11, b11, w12, b12, w21, b21, w22, b22,
                             B=B, nin=nin, nout=nout, H=H, W=W, pad1=pad1, pad2=pad2)

    out = jax.block_until_ready(forward(x))

    ref = reference_forward(x, wdh, bdh, wdw, bdw, wp, bp,
                            w11, b11, w12, b12, w21, b21, w22, b22,
                            pad1, pad2, mask2d)
    np.testing.assert_allclose(np.asarray(out), np.asarray(ref), rtol=2e-2, atol=2e-2)
    print("KERNEL_OK")
</pallas_src>

<mosaic_0001>
module attributes {stable_mosaic.version = 11 : i64} {
  func.func @_le_dsc2d_kernel(%arg0: i32, %arg1: memref<1x8x49xbf16, #tpu.memory_space<vmem>>, %arg2: memref<49x768xbf16, #tpu.memory_space<vmem>>, %arg3: memref<8x152xf32, #tpu.memory_space<vmem>>, %arg4: memref<16x170xf32, #tpu.memory_space<vmem>>, %arg5: memref<1x16x128xf32, #tpu.memory_space<vmem>>) attributes {dimension_semantics = [#tpu.dimension_semantics<parallel>], iteration_bounds = array<i64: 1>, scalar_prefetch = 0 : i64, scratch_operands = 0 : i64, tpu.core_type = #tpu.core_type<tc>, window_params = [{transform_indices = @transform_0, window_bounds = array<i64: 1, 8, 49>}, {pipeline_mode = #tpu.pipeline_mode<synchronous>, transform_indices = @transform_1, window_bounds = array<i64: 49, 768>}, {pipeline_mode = #tpu.pipeline_mode<synchronous>, transform_indices = @transform_2, window_bounds = array<i64: 8, 152>}, {pipeline_mode = #tpu.pipeline_mode<synchronous>, transform_indices = @transform_3, window_bounds = array<i64: 16, 170>}, {transform_indices = @transform_4, window_bounds = array<i64: 1, 16, 128>}]} {
    %c0 = arith.constant 0 : index
    %c0_0 = arith.constant 0 : index
    %c0_1 = arith.constant 0 : index
    %0 = vector.load %arg1[%c0, %c0_0, %c0_1] : memref<1x8x49xbf16, #tpu.memory_space<vmem>>, vector<1x8x49xbf16>
    %1 = vector.shape_cast %0 : vector<1x8x49xbf16> to vector<8x49xbf16>
    %c0_2 = arith.constant 0 : index
    %c0_3 = arith.constant 0 : index
    %2 = vector.load %arg2[%c0_2, %c0_3] : memref<49x768xbf16, #tpu.memory_space<vmem>>, vector<49x768xbf16>
    %cst = arith.constant dense<0.000000e+00> : vector<8x768xf32>
    %3 = tpu.matmul %1, %2, %cst {dimension_numbers = #tpu.dot_dimension_numbers<[1], [0], [0], [1], [0, 0, 1, 1], [], []>} : vector<8x49xbf16>, vector<49x768xbf16>, vector<8x768xf32> -> vector<8x768xf32>
    %c0_4 = arith.constant 0 : index
    %c0_5 = arith.constant 0 : index
    %4 = vector.load %arg3[%c0_4, %c0_5] : memref<8x152xf32, #tpu.memory_space<vmem>>, vector<8x152xf32>
    %5 = vector.extract_strided_slice %4 {offsets = [0, 0], sizes = [8, 128], strides = [1, 1]} : vector<8x152xf32> to vector<8x128xf32>
    %6 = vector.extract_strided_slice %4 {offsets = [0, 128], sizes = [8, 16], strides = [1, 1]} : vector<8x152xf32> to vector<8x16xf32>
    %7 = vector.extract_strided_slice %4 {offsets = [0, 144], sizes = [8, 6], strides = [1, 1]} : vector<8x152xf32> to vector<8x6xf32>
    %8 = vector.extract_strided_slice %4 {offsets = [0, 150], sizes = [8, 2], strides = [1, 1]} : vector<8x152xf32> to vector<8x2xf32>
    %9 = vector.extract_strided_slice %7 {offsets = [0, 0], sizes = [8, 1], strides = [1, 1]} : vector<8x6xf32> to vector<8x1xf32>
    %10 = vector.extract_strided_slice %3 {offsets = [0, 0], sizes = [8, 128], strides = [1, 1]} : vector<8x768xf32> to vector<8x128xf32>
    %11 = vector.broadcast %9 : vector<8x1xf32> to vector<8x128xf32>
    %12 = arith.mulf %11, %10 : vector<8x128xf32>
    %13 = arith.addf %5, %12 : vector<8x128xf32>
    %14 = vector.extract_strided_slice %7 {offsets = [0, 1], sizes = [8, 1], strides = [1, 1]} : vector<8x6xf32> to vector<8x1xf32>
    %15 = vector.extract_strided_slice %3 {offsets = [0, 128], sizes = [8, 128], strides = [1, 1]} : vector<8x768xf32> to vector<8x128xf32>
    %16 = vector.broadcast %14 : vector<8x1xf32> to vector<8x128xf32>
    %17 = arith.mulf %16, %15 : vector<8x128xf32>
    %18 = arith.addf %13, %17 : vector<8x128xf32>
    %19 = vector.extract_strided_slice %7 {offsets = [0, 2], sizes = [8, 1], strides = [1, 1]} : vector<8x6xf32> to vector<8x1xf32>
    %20 = vector.extract_strided_slice %3 {offsets = [0, 256], sizes = [8, 128], strides = [1, 1]} : vector<8x768xf32> to vector<8x128xf32>
    %21 = vector.broadcast %19 : vector<8x1xf32> to vector<8x128xf32>
    %22 = arith.mulf %21, %20 : vector<8x128xf32>
    %23 = arith.addf %18, %22 : vector<8x128xf32>
    %24 = vector.extract_strided_slice %7 {offsets = [0, 3], sizes = [8, 1], strides = [1, 1]} : vector<8x6xf32> to vector<8x1xf32>
    %25 = vector.extract_strided_slice %3 {offsets = [0, 384], sizes = [8, 128], strides = [1, 1]} : vector<8x768xf32> to vector<8x128xf32>
    %26 = vector.broadcast %24 : vector<8x1xf32> to vector<8x128xf32>
    %27 = arith.mulf %26, %25 : vector<8x128xf32>
    %28 = arith.addf %23, %27 : vector<8x128xf32>
    %29 = vector.extract_strided_slice %7 {offsets = [0, 4], sizes = [8, 1], strides = [1, 1]} : vector<8x6xf32> to vector<8x1xf32>
    %30 = vector.extract_strided_slice %3 {offsets = [0, 512], sizes = [8, 128], strides = [1, 1]} : vector<8x768xf32> to vector<8x128xf32>
    %31 = vector.broadcast %29 : vector<8x1xf32> to vector<8x128xf32>
    %32 = arith.mulf %31, %30 : vector<8x128xf32>
    %33 = arith.addf %28, %32 : vector<8x128xf32>
    %34 = vector.extract_strided_slice %7 {offsets = [0, 5], sizes = [8, 1], strides = [1, 1]} : vector<8x6xf32> to vector<8x1xf32>
    %35 = vector.extract_strided_slice %3 {offsets = [0, 640], sizes = [8, 128], strides = [1, 1]} : vector<8x768xf32> to vector<8x128xf32>
    %36 = vector.broadcast %34 : vector<8x1xf32> to vector<8x128xf32>
    %37 = arith.mulf %36, %35 : vector<8x128xf32>
    %38 = arith.addf %33, %37 : vector<8x128xf32>
    %39 = vector.extract_strided_slice %38 {offsets = [0, 49], sizes = [8, 2], strides = [1, 1]} : vector<8x128xf32> to vector<8x2xf32>
    %40 = tpu.iota {dimensions = array<i32: 1>} : vector<8x2xi32>
    %c0_i32 = arith.constant 0 : i32
    %41 = vector.broadcast %c0_i32 : i32 to vector<8x2xi32>
    %42 = arith.cmpi eq, %40, %41 : vector<8x2xi32>
    %cst_6 = arith.constant 0.000000e+00 : f32
    %43 = vector.broadcast %cst_6 : f32 to vector<8x2xf32>
    %44 = arith.select %42, %39, %43 : vector<8x2xi1>, vector<8x2xf32>
    %c1_i32 = arith.constant 1 : i32
    %45 = vector.broadcast %c1_i32 : i32 to vector<8x2xi32>
    %46 = arith.cmpi eq, %40, %45 : vector<8x2xi32>
    %cst_7 = arith.constant 0.000000e+00 : f32
    %47 = vector.broadcast %cst_7 : f32 to vector<8x2xf32>
    %48 = arith.select %46, %39, %47 : vector<8x2xi1>, vector<8x2xf32>
    %49 = tpu.concatenate %44, %48 in 0 : vector<8x2xf32>, vector<8x2xf32> -> vector<16x2xf32>
    %cst_8 = arith.constant dense<0.000000e+00> : vector<8x2xf32>
    %50 = tpu.matmul %6, %49, %cst_8 {dimension_numbers = #tpu.dot_dimension_numbers<[1], [0], [0], [1], [0, 0, 1, 1], [], []>} : vector<8x16xf32>, vector<16x2xf32>, vector<8x2xf32> -> vector<8x2xf32>
    %51 = arith.addf %50, %8 : vector<8x2xf32>
    %52 = arith.negf %51 : vector<8x2xf32>
    %53 = math.exp %52 : vector<8x2xf32>
    %cst_9 = arith.constant 1.000000e+00 : f32
    %54 = vector.broadcast %cst_9 : f32 to vector<8x2xf32>
    %55 = arith.addf %54, %53 : vector<8x2xf32>
    %56 = arith.divf %54, %55 : vector<8x2xf32>
    %57 = vector.extract_strided_slice %56 {offsets = [0, 0], sizes = [8, 1], strides = [1, 1]} : vector<8x2xf32> to vector<8x1xf32>
    %58 = vector.extract_strided_slice %56 {offsets = [0, 1], sizes = [8, 1], strides = [1, 1]} : vector<8x2xf32> to vector<8x1xf32>
    %59 = arith.mulf %57, %58 : vector<8x1xf32>
    %cst_10 = arith.constant 2.000000e-01 : f32
    %60 = vector.broadcast %cst_10 : f32 to vector<8x1xf32>
    %61 = arith.subf %59, %60 : vector<8x1xf32>
    %cst_11 = arith.constant 2.000000e+00 : f32
    %62 = vector.broadcast %cst_11 : f32 to vector<8x1xf32>
    %63 = arith.mulf %61, %62 : vector<8x1xf32>
    %64 = arith.negf %63 : vector<8x1xf32>
    %65 = math.exp %64 : vector<8x1xf32>
    %cst_12 = arith.constant 1.000000e+00 : f32
    %66 = vector.broadcast %cst_12 : f32 to vector<8x1xf32>
    %67 = arith.addf %66, %65 : vector<8x1xf32>
    %68 = arith.divf %66, %67 : vector<8x1xf32>
    %69 = vector.broadcast %68 : vector<8x1xf32> to vector<8x128xf32>
    %70 = arith.mulf %38, %69 : vector<8x128xf32>
    %c0_13 = arith.constant 0 : index
    %c0_14 = arith.constant 0 : index
    %71 = vector.load %arg4[%c0_13, %c0_14] : memref<16x170xf32, #tpu.memory_space<vmem>>, vector<16x170xf32>
    %72 = vector.extract_strided_slice %71 {offsets = [0, 0], sizes = [16, 128], strides = [1, 1]} : vector<16x170xf32> to vector<16x128xf32>
    %73 = vector.extract_strided_slice %71 {offsets = [0, 128], sizes = [16, 32], strides = [1, 1]} : vector<16x170xf32> to vector<16x32xf32>
    %74 = vector.extract_strided_slice %71 {offsets = [0, 160], sizes = [16, 8], strides = [1, 1]} : vector<16x170xf32> to vector<16x8xf32>
    %75 = vector.extract_strided_slice %71 {offsets = [0, 168], sizes = [16, 2], strides = [1, 1]} : vector<16x170xf32> to vector<16x2xf32>
    %cst_15 = arith.constant dense<0.000000e+00> : vector<16x128xf32>
    %76 = tpu.matmul %74, %70, %cst_15 {dimension_numbers = #tpu.dot_dimension_numbers<[1], [0], [0], [1], [0, 0, 1, 1], [], []>} : vector<16x8xf32>, vector<8x128xf32>, vector<16x128xf32> -> vector<16x128xf32>
    %77 = arith.addf %76, %72 : vector<16x128xf32>
    %78 = vector.extract_strided_slice %77 {offsets = [0, 49], sizes = [16, 2], strides = [1, 1]} : vector<16x128xf32> to vector<16x2xf32>
    %79 = tpu.iota {dimensions = array<i32: 1>} : vector<16x2xi32>
    %c0_i32_16 = arith.constant 0 : i32
    %80 = vector.broadcast %c0_i32_16 : i32 to vector<16x2xi32>
    %81 = arith.cmpi eq, %79, %80 : vector<16x2xi32>
    %cst_17 = arith.constant 0.000000e+00 : f32
    %82 = vector.broadcast %cst_17 : f32 to vector<16x2xf32>
    %83 = arith.select %81, %78, %82 : vector<16x2xi1>, vector<16x2xf32>
    %c1_i32_18 = arith.constant 1 : i32
    %84 = vector.broadcast %c1_i32_18 : i32 to vector<16x2xi32>
    %85 = arith.cmpi eq, %79, %84 : vector<16x2xi32>
    %cst_19 = arith.constant 0.000000e+00 : f32
    %86 = vector.broadcast %cst_19 : f32 to vector<16x2xf32>
    %87 = arith.select %85, %78, %86 : vector<16x2xi1>, vector<16x2xf32>
    %88 = tpu.concatenate %83, %87 in 0 : vector<16x2xf32>, vector<16x2xf32> -> vector<32x2xf32>
    %cst_20 = arith.constant dense<0.000000e+00> : vector<16x2xf32>
    %89 = tpu.matmul %73, %88, %cst_20 {dimension_numbers = #tpu.dot_dimension_numbers<[1], [0], [0], [1], [0, 0, 1, 1], [], []>} : vector<16x32xf32>, vector<32x2xf32>, vector<16x2xf32> -> vector<16x2xf32>
    %90 = arith.addf %89, %75 : vector<16x2xf32>
    %91 = arith.negf %90 : vector<16x2xf32>
    %92 = math.exp %91 : vector<16x2xf32>
    %cst_21 = arith.constant 1.000000e+00 : f32
    %93 = vector.broadcast %cst_21 : f32 to vector<16x2xf32>
    %94 = arith.addf %93, %92 : vector<16x2xf32>
    %95 = arith.divf %93, %94 : vector<16x2xf32>
    %96 = vector.extract_strided_slice %95 {offsets = [0, 0], sizes = [16, 1], strides = [1, 1]} : vector<16x2xf32> to vector<16x1xf32>
    %97 = vector.extract_strided_slice %95 {offsets = [0, 1], sizes = [16, 1], strides = [1, 1]} : vector<16x2xf32> to vector<16x1xf32>
    %98 = arith.mulf %96, %97 : vector<16x1xf32>
    %cst_22 = arith.constant 2.000000e-01 : f32
    %99 = vector.broadcast %cst_22 : f32 to vector<16x1xf32>
    %100 = arith.subf %98, %99 : vector<16x1xf32>
    %cst_23 = arith.constant 2.000000e+00 : f32
    %101 = vector.broadcast %cst_23 : f32 to vector<16x1xf32>
    %102 = arith.mulf %100, %101 : vector<16x1xf32>
    %103 = arith.negf %102 : vector<16x1xf32>
    %104 = math.exp %103 : vector<16x1xf32>
    %cst_24 = arith.constant 1.000000e+00 : f32
    %105 = vector.broadcast %cst_24 : f32 to vector<16x1xf32>
    %106 = arith.addf %105, %104 : vector<16x1xf32>
    %107 = arith.divf %105, %106 : vector<16x1xf32>
    %108 = vector.broadcast %107 : vector<16x1xf32> to vector<16x128xf32>
    %109 = arith.mulf %77, %108 : vector<16x128xf32>
    %c0_25 = arith.constant 0 : index
    %c0_26 = arith.constant 0 : index
    %c0_27 = arith.constant 0 : index
    %110 = vector.load %arg5[%c0_25, %c0_26, %c0_27] : memref<1x16x128xf32, #tpu.memory_space<vmem>>, vector<1x16x128xf32>
    %111 = vector.shape_cast %110 : vector<1x16x128xf32> to vector<16x128xf32>
    %112 = vector.shape_cast %109 : vector<16x128xf32> to vector<1x16x128xf32>
    tpu.vector_store %arg5[%c0_25, %c0_26, %c0_27], %112 {strides = array<i32>} : memref<1x16x128xf32, #tpu.memory_space<vmem>>, vector<1x16x128xf32>,
    return
  }
  func.func @transform_0(%arg0: i32) -> (i32, i32, i32) {
    %c0_i32 = arith.constant 0 : i32
    %c0_i32_0 = arith.constant 0 : i32
    %c0_i32_1 = arith.constant 0 : i32
    return %arg0, %c0_i32, %c0_i32_0 : i32, i32, i32
  }
  func.func @transform_1(%arg0: i32) -> (i32, i32) {
    %c0_i32 = arith.constant 0 : i32
    %c0_i32_0 = arith.constant 0 : i32
    %c0_i32_1 = arith.constant 0 : i32
    return %c0_i32, %c0_i32_0 : i32, i32
  }
  func.func @transform_2(%arg0: i32) -> (i32, i32) {
    %c0_i32 = arith.constant 0 : i32
    %c0_i32_0 = arith.constant 0 : i32
    %c0_i32_1 = arith.constant 0 : i32
    return %c0_i32, %c0_i32_0 : i32, i32
  }
  func.func @transform_3(%arg0: i32) -> (i32, i32) {
    %c0_i32 = arith.constant 0 : i32
    %c0_i32_0 = arith.constant 0 : i32
    %c0_i32_1 = arith.constant 0 : i32
    return %c0_i32, %c0_i32_0 : i32, i32
  }
  func.func @transform_4(%arg0: i32) -> (i32, i32, i32) {
    %c0_i32 = arith.constant 0 : i32
    %c0_i32_0 = arith.constant 0 : i32
    %c0_i32_1 = arith.constant 0 : i32
    return %arg0, %c0_i32, %c0_i32_0 : i32, i32, i32
  }
}

</mosaic_0001>

<llo_original>
// kernel: fwd.1
$region0: #{fwd.1}
  #allocation0 [shape = 'u32[]', space=smem, size = 0x4, offset = 0x4, fixed_abs, tag = 'smem constant byte address 0x4 - core index']
  #allocation1 [shape = 'u32[144,128]{1,0:T(1,128)}', space=vmem, size = 0x12000, scoped, tag = 'internal scratch']
  %s0 = inlined_call_operand.vmem [shape: bf16[1,8,49], index: 0, kind: input, shape index: {}]
  %s1 = inlined_call_operand.vmem [shape: bf16[49,768], index: 1, kind: input, shape index: {}]
  %s2 = inlined_call_operand.vmem [shape: f32[8,152], index: 2, kind: input, shape index: {}]
  %s3 = inlined_call_operand.hbm [shape: f32[16,170], index: 3, kind: input, shape index: {}]
  %s4 = inlined_call_operand.vmem [shape: f32[1,16,128], index: 4, kind: output, shape index: {}]
  %s5 = sld [smem:[#allocation0]]
  $region30: #{fwd.1} parent=0
    _
  %s7 = ssub.s32 1, %s5
  %s8 = scalar_select 0, %s7, %s5
  $region1: #{fwd.1} parent=0
    #allocation2 [shape = 'u8[16384]{0}', space=vmem, size = 0x4000, scoped, tag = 'input window, operand 3, single buffered']
    #allocation3 [shape = 's32[1]{0}', space=sflag, size = 0x4, scoped, tag = 'scoped memory for fwd.1']
    %9 = vsyncpa [#allocation3], 0
    // Predicated region
    $region2: #{fwd.1} parent=1 // pred_check
      _
    $region3: #{fwd.1} parent=1 // pred_check_branch
      %11 = sbr.rel (0) target = $region5
    $region4: #{fwd.1} parent=1 // pred_region
      _
    $region5: #{fwd.1} parent=1 // pred_fallthru
      _
    // Predicated region
    $region6: #{fwd.1} parent=1 // pred_check
      _
    $region7: #{fwd.1} parent=1 // pred_check_branch
      %13 = sbr.rel (0) target = $region9
    $region8: #{fwd.1} parent=1 // pred_region
      _
    $region9: #{fwd.1} parent=1 // pred_fallthru
      _
    // Predicated region
    $region10: #{fwd.1} parent=1 // pred_check
      _
    $region11: #{fwd.1} parent=1 // pred_check_branch
      %15 = sbr.rel (0) target = $region13
    $region12: #{fwd.1} parent=1 // pred_region
      _
    $region13: #{fwd.1} parent=1 // pred_fallthru
      _
    // Predicated region
    $region14: #{fwd.1} parent=1 // pred_check
      _
    $region15: #{fwd.1} parent=1 // pred_check_branch
      %17 = sbr.rel (0) target = $region17
    $region16: #{fwd.1} parent=1 // pred_region
      %s19 = ssub.s32 512, 512
      %20 = vsyncadd [#allocation3], %s19
      %s21 = sshll.u32 [#allocation2], 4
      %s22 = int_to_ptr.vmem [resolvable:$true] %s21
      %27 = dma.hbm_to_vmem [thread:$0]  %s3, 512, %s22, [#allocation3], 256, 256, 16
    $region17: #{fwd.1} parent=1 // pred_fallthru
      _
    // Predicated region
    $region18: #{fwd.1} parent=1 // pred_check
      _
    $region19: #{fwd.1} parent=1 // pred_check_branch
      %29 = sbr.rel (0) target = $region21
    $region20: #{fwd.1} parent=1 // pred_region
      %30 = dma.done [#allocation3], 512
    $region21: #{fwd.1} parent=1 // pred_fallthru
      _
    %v32 = vld [vmem:[%s0] sm:$0xf]
    %v33 = vld [vmem:[%s1] sm:$0xff]
    %v34 = vld [vmem:[%s1 + $0x8] sm:$0xff]
    %v35 = vld [vmem:[%s1 + $0x10] sm:$0xff]
    %v36 = vld [vmem:[%s1 + $0x18] sm:$0xff]
    %v37 = vld [vmem:[%s1 + $0x20] sm:$0xff]
    %v38 = vld [vmem:[%s1 + $0x28] sm:$0xff]
    %v39 = vld [vmem:[%s1 + $0x30] sm:$0xff]
    %v40 = vld [vmem:[%s1 + $0x38] sm:$0xff]
    %v41 = vld [vmem:[%s1 + $0x40] sm:$0xff]
    %v42 = vld [vmem:[%s1 + $0x48] sm:$0xff]
    %v43 = vld [vmem:[%s1 + $0x50] sm:$0xff]
    %v44 = vld [vmem:[%s1 + $0x58] sm:$0xff]
    %v45 = vld [vmem:[%s1 + $0x60] sm:$0xff]
    %v46 = vld [vmem:[%s1 + $0x68] sm:$0xff]
    %v47 = vld [vmem:[%s1 + $0x70] sm:$0xff]
    %v48 = vld [vmem:[%s1 + $0x78] sm:$0xff]
    %v49 = vld [vmem:[%s1 + $0x80] sm:$0xff]
    %v50 = vld [vmem:[%s1 + $0x88] sm:$0xff]
    %v51 = vld [vmem:[%s1 + $0x90] sm:$0x11]
    %v52 = vld [vmem:[%s1 + $0x98] sm:$0x11]
    %v53 = vld [vmem:[%s1 + $0xa0] sm:$0x11]
    %v75 = vunpack.c.l.b16 %v33
    %v76 = vunpack.c.h.b16 %v33
    %v77 = vunpack.c.l.b16 %v34
    %v78 = vunpack.c.h.b16 %v34
    %v79 = vunpack.c.l.b16 %v35
    %v80 = vunpack.c.h.b16 %v35
    %v81 = vunpack.c.l.b16 %v36
    %v82 = vunpack.c.h.b16 %v36
    %v83 = vunpack.c.l.b16 %v37
    %v84 = vunpack.c.h.b16 %v37
    %v85 = vunpack.c.l.b16 %v38
    %v86 = vunpack.c.h.b16 %v38
    %v87 = vunpack.c.l.b16 %v39
    %v88 = vunpack.c.h.b16 %v39
    %v89 = vunpack.c.l.b16 %v40
    %v90 = vunpack.c.h.b16 %v40
    %v91 = vunpack.c.l.b16 %v41
    %v92 = vunpack.c.h.b16 %v41
    %v93 = vunpack.c.l.b16 %v42
    %v94 = vunpack.c.h.b16 %v42
    %v95 = vunpack.c.l.b16 %v43
    %v96 = vunpack.c.h.b16 %v43
    %v97 = vunpack.c.l.b16 %v44
    %v98 = vunpack.c.h.b16 %v44
    %v99 = vunpack.c.l.b16 %v45
    %v100 = vunpack.c.h.b16 %v45
    %v101 = vunpack.c.l.b16 %v46
    %v102 = vunpack.c.h.b16 %v46
    %v103 = vunpack.c.l.b16 %v47
    %v104 = vunpack.c.h.b16 %v47
    %v105 = vunpack.c.l.b16 %v48
    %v106 = vunpack.c.h.b16 %v48
    %v107 = vunpack.c.l.b16 %v49
    %v108 = vunpack.c.h.b16 %v49
    %v109 = vunpack.c.l.b16 %v50
    %v110 = vunpack.c.h.b16 %v50
    %v111 = vunpack.c.l.b16 %v51
    %v112 = vunpack.c.h.b16 %v51
    %v113 = vunpack.c.l.b16 %v52
    %v114 = vunpack.c.h.b16 %v52
    %v115 = vunpack.c.l.b16 %v53
    %v116 = vunpack.c.h.b16 %v53
    %v117 = vpack.c.b16 %v81, %v75
    %v118 = vpack.c.b16 %v82, %v76
    %v119 = vpack.c.b16 %v83, %v77
    %v120 = vpack.c.b16 %v84, %v78
    %v121 = vpack.c.b16 %v85, %v79
    %v122 = vpack.c.b16 %v86, %v80
    %v123 = vpack.c.b16 %v93, %v87
    %v124 = vpack.c.b16 %v94, %v88
    %v125 = vpack.c.b16 %v95, %v89
    %v126 = vpack.c.b16 %v96, %v90
    %v127 = vpack.c.b16 %v97, %v91
    %v128 = vpack.c.b16 %v98, %v92
    %v129 = vpack.c.b16 %v105, %v99
    %v130 = vpack.c.b16 %v106, %v100
    %v131 = vpack.c.b16 %v107, %v101
    %v132 = vpack.c.b16 %v108, %v102
    %v133 = vpack.c.b16 %v109, %v103
    %v134 = vpack.c.b16 %v110, %v104
    %v135 = vpack.c.b16 %v111, %v111
    %v136 = vpack.c.b16 %v112, %v112
    %v137 = vpack.c.b16 %v113, %v113
    %v138 = vpack.c.b16 %v114, %v114
    %v139 = vpack.c.b16 %v115, %v115
    %v140 = vpack.c.b16 %v116, %v116
    %vm159 = vcmask 400384
    %v161 = vsel %vm159, %v32, 0
    %vm163 = vcmask 1040384
    %v164 = vsel 0, 4294967295, 65535
    %v165 = vsel %vm163, %v164, 0
    %v167 = vand.u32 %v135, %v165
    %v170 = vand.u32 %v136, %v165
    %v173 = vand.u32 %v137, %v165
    %v176 = vand.u32 %v138, %v165
    %v179 = vand.u32 %v139, %v165
    %v182 = vand.u32 %v140, %v165
    %184 = vmatprep.subr.bf16.mxu0 %v118
    %185 = vmatpush1.bf16.msra.mxu0 %v117
    %186 = vmatprep.subr.bf16.mxu0 %v124
    %187 = vmatpush1.bf16.msra.mxu0 %v123
    %188 = vmatprep.subr.bf16.mxu0 %v130
    %189 = vmatpush1.bf16.msra.mxu0 %v129
    %190 = vmatprep.subr.bf16.mxu0 %v170
    %191 = vmatpush1.bf16.msra.mxu0 %v167
    %192 = vmatprep.subr.bf16.mxu0 0
    %193 = vmatpush1.bf16.msra.mxu0 0
    %194 = vmatprep.subr.bf16.mxu0 0
    %195 = vmatpush1.bf16.msra.mxu0 0
    %196 = vmatprep.subr.bf16.mxu0 0
    %197 = vmatpush1.bf16.msra.mxu0 0
    %198 = vmatprep.subr.bf16.mxu0 0
    %199 = vmatpush1.bf16.msra.mxu0 0
    %200 = vmatprep.subr.bf16.mxu0 0
    %201 = vmatpush1.bf16.msra.mxu0 0
    %202 = vmatprep.subr.bf16.mxu0 0
    %203 = vmatpush1.bf16.msra.mxu0 0
    %204 = vmatprep.subr.bf16.mxu0 0
    %205 = vmatpush1.bf16.msra.mxu0 0
    %206 = vmatprep.subr.bf16.mxu0 0
    %207 = vmatpush1.bf16.msra.mxu0 0
    %208 = vmatprep.subr.bf16.mxu0 0
    %209 = vmatpush1.bf16.msra.mxu0 0
    %210 = vmatprep.subr.bf16.mxu0 0
    %211 = vmatpush1.bf16.msra.mxu0 0
    %212 = vmatprep.subr.bf16.mxu0 0
    %213 = vmatpush1.bf16.msra.mxu0 0
    %214 = vmatprep.subr.bf16.mxu0 0
    %215 = vmatpush1.bf16.msra.mxu0 0
    %216 = vmatprep.mubr.bf16.mxu0 0
    %217 = vmatmul.mubr.bf16.gmra.mrb[0].mxu0 %v161
    %v218 = vpop.f32.mrb[0].mxu0
    %v219 = vadd.f32 0.0, %v218
    %v220 = vpop.f32.mrb[0].mxu0
    %v221 = vadd.f32 0.0, %v220
    %v222 = vpop.f32.mrb[0].mxu0
    %v223 = vpop.f32.mrb[0].mxu0
    %224 = vdwg.mxu0
    %225 = vmatprep.subr.bf16.mxu0 %v120
    %226 = vmatpush1.bf16.msra.mxu0 %v119
    %227 = vmatprep.subr.bf16.mxu0 %v126
    %228 = vmatpush1.bf16.msra.mxu0 %v125
    %229 = vmatprep.subr.bf16.mxu0 %v132
    %230 = vmatpush1.bf16.msra.mxu0 %v131
    %231 = vmatprep.subr.bf16.mxu0 %v176
    %232 = vmatpush1.bf16.msra.mxu0 %v173
    %233 = vmatprep.subr.bf16.mxu0 0
    %234 = vmatpush1.bf16.msra.mxu0 0
    %235 = vmatprep.subr.bf16.mxu0 0
    %236 = vmatpush1.bf16.msra.mxu0 0
    %237 = vmatprep.subr.bf16.mxu0 0
    %238 = vmatpush1.bf16.msra.mxu0 0
    %239 = vmatprep.subr.bf16.mxu0 0
    %240 = vmatpush1.bf16.msra.mxu0 0
    %241 = vmatprep.subr.bf16.mxu0 0
    %242 = vmatpush1.bf16.msra.mxu0 0
    %243 = vmatprep.subr.bf16.mxu0 0
    %244 = vmatpush1.bf16.msra.mxu0 0
    %245 = vmatprep.subr.bf16.mxu0 0
    %246 = vmatpush1.bf16.msra.mxu0 0
    %247 = vmatprep.subr.bf16.mxu0 0
    %248 = vmatpush1.bf16.msra.mxu0 0
    %249 = vmatprep.subr.bf16.mxu0 0
    %250 = vmatpush1.bf16.msra.mxu0 0
    %251 = vmatprep.subr.bf16.mxu0 0
    %252 = vmatpush1.bf16.msra.mxu0 0
    %253 = vmatprep.subr.bf16.mxu0 0
    %254 = vmatpush1.bf16.msra.mxu0 0
    %255 = vmatprep.subr.bf16.mxu0 0
    %256 = vmatpush1.bf16.msra.mxu0 0
    %257 = vmatprep.mubr.bf16.mxu0 0
    %258 = vmatmul.mubr.bf16.gmra.mrb[0].mxu0 %v161
    %v259 = vpop.f32.mrb[0].mxu0
    %v260 = vadd.f32 0.0, %v259
    %v261 = vpop.f32.mrb[0].mxu0
    %v262 = vadd.f32 0.0, %v261
    %v263 = vpop.f32.mrb[0].mxu0
    %v264 = vpop.f32.mrb[0].mxu0
    %265 = vdwg.mxu0
    %266 = vmatprep.subr.bf16.mxu0 %v122
    %267 = vmatpush1.bf16.msra.mxu0 %v121
    %268 = vmatprep.subr.bf16.mxu0 %v128
    %269 = vmatpush1.bf16.msra.mxu0 %v127
    %270 = vmatprep.subr.bf16.mxu0 %v134
    %271 = vmatpush1.bf16.msra.mxu0 %v133
    %272 = vmatprep.subr.bf16.mxu0 %v182
    %273 = vmatpush1.bf16.msra.mxu0 %v179
    %274 = vmatprep.subr.bf16.mxu0 0
    %275 = vmatpush1.bf16.msra.mxu0 0
    %276 = vmatprep.subr.bf16.mxu0 0
    %277 = vmatpush1.bf16.msra.mxu0 0
    %278 = vmatprep.subr.bf16.mxu0 0
    %279 = vmatpush1.bf16.msra.mxu0 0
    %280 = vmatprep.subr.bf16.mxu0 0
    %281 = vmatpush1.bf16.msra.mxu0 0
    %282 = vmatprep.subr.bf16.mxu0 0
    %283 = vmatpush1.bf16.msra.mxu0 0
    %284 = vmatprep.subr.bf16.mxu0 0
    %285 = vmatpush1.bf16.msra.mxu0 0
    %286 = vmatprep.subr.bf16.mxu0 0
    %287 = vmatpush1.bf16.msra.mxu0 0
    %288 = vmatprep.subr.bf16.mxu0 0
    %289 = vmatpush1.bf16.msra.mxu0 0
    %290 = vmatprep.subr.bf16.mxu0 0
    %291 = vmatpush1.bf16.msra.mxu0 0
    %292 = vmatprep.subr.bf16.mxu0 0
    %293 = vmatpush1.bf16.msra.mxu0 0
    %294 = vmatprep.subr.bf16.mxu0 0
    %295 = vmatpush1.bf16.msra.mxu0 0
    %296 = vmatprep.subr.bf16.mxu0 0
    %297 = vmatpush1.bf16.msra.mxu0 0
    %298 = vmatprep.mubr.bf16.mxu0 0
    %299 = vmatmul.mubr.bf16.gmra.mrb[0].mxu0 %v161
    %v300 = vpop.f32.mrb[0].mxu0
    %v301 = vadd.f32 0.0, %v300
    %v302 = vpop.f32.mrb[0].mxu0
    %v303 = vadd.f32 0.0, %v302
    %v304 = vpop.f32.mrb[0].mxu0
    %v305 = vpop.f32.mrb[0].mxu0
    %306 = vdwg.mxu0
    %v307 = vld [vmem:[%s2] sm:$0xff]
    %v308 = vld [vmem:[%s2 + $0x8] sm:$0xff]
    %310 = vset.pattern.permute.xlu0 16
    %311 = vperm.xlu0 %310, %v308
    %v312 = vpop.permute.xlu0 %311
    %v314 = vmul.f32 %v312, %v219
    %v315 = vadd.f32 %v307, %v314
    %316 = vset.pattern.permute.xlu0 17
    %317 = vperm.xlu0 %316, %v308
    %v318 = vpop.permute.xlu0 %317
    %v320 = vmul.f32 %v318, %v221
    %v321 = vadd.f32 %v315, %v320
    %322 = vset.pattern.permute.xlu0 18
    %323 = vperm.xlu0 %322, %v308
    %v324 = vpop.permute.xlu0 %323
    %v326 = vmul.f32 %v324, %v260
    %v327 = vadd.f32 %v321, %v326
    %328 = vset.pattern.permute.xlu0 19
    %329 = vperm.xlu0 %328, %v308
    %v330 = vpop.permute.xlu0 %329
    %v332 = vmul.f32 %v330, %v262
    %v333 = vadd.f32 %v327, %v332
    %334 = vset.pattern.permute.xlu0 20
    %335 = vperm.xlu0 %334, %v308
    %v336 = vpop.permute.xlu0 %335
    %v338 = vmul.f32 %v336, %v301
    %v339 = vadd.f32 %v333, %v338
    %340 = vset.pattern.permute.xlu0 21
    %341 = vperm.xlu0 %340, %v308
    %v342 = vpop.permute.xlu0 %341
    %v344 = vmul.f32 %v342, %v303
    %v345 = vadd.f32 %v339, %v344
    %v346 = vlaneseq
    %v347 = vand.u32 %v346, 127
    %vm348 = vcmp.eq.s32.totalorder %v347, 0
    %350 = vrot.lane.b32.xlu0 %v345, 79
    %v351 = vpop.permute.xlu0 %350
    %v353 = vsel %vm348, %v351, 0.0
    %vm354 = vcmp.eq.s32.totalorder %v347, 1
    %v355 = vsel %vm354, %v351, 0.0
    %356 = vrot.lane.b32.xlu0 %v308, 106
    %v357 = vpop.permute.xlu0 %356
    %vm359 = vcmask 130048
    %v360 = vsel %vm359, %v308, 0
    %362 = vmatprep.subr.mxu0 0.0
    %363 = vmatpush1.msra.mxu0 %v353
    %364 = vmatprep.subr.mxu0 0.0
    %365 = vmatpush1.msra.mxu0 %v355
    %366 = vmatprep.subr.mxu0 0.0
    %367 = vmatpush1.msra.mxu0 0.0
    %368 = vmatprep.subr.mxu0 0.0
    %369 = vmatpush1.msra.mxu0 0.0
    %370 = vmatprep.subr.mxu0 0.0
    %371 = vmatpush1.msra.mxu0 0.0
    %372 = vmatprep.subr.mxu0 0.0
    %373 = vmatpush1.msra.mxu0 0.0
    %374 = vmatprep.subr.mxu0 0.0
    %375 = vmatpush1.msra.mxu0 0.0
    %376 = vmatprep.subr.mxu0 0.0
    %377 = vmatpush1.msra.mxu0 0.0
    %378 = vmatprep.subr.mxu0 0.0
    %379 = vmatpush1.msra.mxu0 0.0
    %380 = vmatprep.subr.mxu0 0.0
    %381 = vmatpush1.msra.mxu0 0.0
    %382 = vmatprep.subr.mxu0 0.0
    %383 = vmatpush1.msra.mxu0 0.0
    %384 = vmatprep.subr.mxu0 0.0
    %385 = vmatpush1.msra.mxu0 0.0
    %386 = vmatprep.subr.mxu0 0.0
    %387 = vmatpush1.msra.mxu0 0.0
    %388 = vmatprep.subr.mxu0 0.0
    %389 = vmatpush1.msra.mxu0 0.0
    %390 = vmatprep.subr.mxu0 0.0
    %391 = vmatpush1.msra.mxu0 0.0
    %392 = vmatprep.subr.mxu0 0.0
    %393 = vmatpush1.msra.mxu0 0.0
    %394 = vmatprep.subr.mxu0 0.0
    %395 = vmatpush1.msra.mxu0 0.0
    %396 = vmatprep.subr.mxu0 0.0
    %397 = vmatpush1.msra.mxu0 0.0
    %398 = vmatprep.subr.mxu0 0.0
    %399 = vmatpush1.msra.mxu0 0.0
    %400 = vmatprep.subr.mxu0 0.0
    %401 = vmatpush1.msra.mxu0 0.0
    %402 = vmatprep.subr.mxu0 0.0
    %403 = vmatpush1.msra.mxu0 0.0
    %404 = vmatprep.subr.mxu0 0.0
    %405 = vmatpush1.msra.mxu0 0.0
    %406 = vmatprep.subr.mxu0 0.0
    %407 = vmatpush1.msra.mxu0 0.0
    %408 = vmatprep.subr.mxu0 0.0
    %409 = vmatpush1.msra.mxu0 0.0
    %410 = vmatprep.subr.mxu0 0.0
    %411 = vmatpush1.msra.mxu0 0.0
    %412 = vmatprep.subr.mxu0 0.0
    %413 = vmatpush1.msra.mxu0 0.0
    %414 = vmatprep.subr.mxu0 0.0
    %415 = vmatpush1.msra.mxu0 0.0
    %416 = vmatprep.subr.mxu0 0.0
    %417 = vmatpush1.msra.mxu0 0.0
    %418 = vmatprep.subr.mxu0 0.0
    %419 = vmatpush1.msra.mxu0 0.0
    %420 = vmatprep.subr.mxu0 0.0
    %421 = vmatpush1.msra.mxu0 0.0
    %422 = vmatprep.subr.mxu0 0.0
    %423 = vmatpush1.msra.mxu0 0.0
    %424 = vmatprep.subr.mxu0 0.0
    %425 = vmatpush1.msra.mxu0 0.0
    %426 = vmatprep.mubr.f32.mxu0 0.0
    %427 = vmatmul.mubr.f32.gmra.mrb[0].mxu0 %v360
    %v428 = vpop.f32.mrb[0].mxu0
    %v429 = vadd.f32 %v357, %v428
    %v430 = vpop.f32.mrb[0].mxu0
    %431 = vdwg.mxu0
    %v432 = vxor.u32 %v429, 2147483648
    %v433 = vmul.f32 %v432, 1.442695
    %v434 = vpow.pop %v433
    %v435 = vadd.f32 %v434, 1.0
    %v436 = vrcp.pop %v435
    %v437 = vmul.f32 1.0, %v436
    %439 = vrot.lane.b32.xlu0 %v437, 127
    %v440 = vpop.permute.xlu0 %439
    %v442 = vmul.f32 %v437, %v440
    %v443 = vsub.f32 %v442, 0.2
    %v444 = vmul.f32 %v443, 2.0
    %v445 = vxor.u32 %v444, 2147483648
    %v446 = vmul.f32 %v445, 1.442695
    %v447 = vpow.pop %v446
    %v448 = vadd.f32 %v447, 1.0
    %v449 = vrcp.pop %v448
    %v450 = vmul.f32 1.0, %v449
    %452 = vset.pattern.permute.xlu0 0
    %453 = vperm.xlu0 %452, %v450
    %v454 = vpop.permute.xlu0 %453
    %v456 = vmul.f32 %v345, %v454
    %v457 = vld [vmem:[#allocation2] sm:$0xff]
    %v458 = vld [vmem:[#allocation2 + $0x8] sm:$0xff]
    %v459 = vld [vmem:[#allocation2 + $0x10] sm:$0xff]
    %v460 = vld [vmem:[#allocation2 + $0x18] sm:$0xff]
    %463 = vrot.lane.b32.xlu0 %v458, 96
    %v464 = vpop.permute.xlu0 %463
    %465 = vrot.lane.b32.xlu0 %v460, 96
    %v466 = vpop.permute.xlu0 %465
    %vm467 = vcmask 64512
    %v468 = vsel %vm467, %v464, 0
    %v470 = vsel %vm467, %v466, 0
    %472 = vmatprep.subr.mxu0 0.0
    %473 = vmatpush1.msra.mxu0 %v456
    %474 = vmatprep.subr.mxu0 0.0
    %475 = vmatpush1.msra.mxu0 0.0
    %476 = vmatprep.subr.mxu0 0.0
    %477 = vmatpush1.msra.mxu0 0.0
    %478 = vmatprep.subr.mxu0 0.0
    %479 = vmatpush1.msra.mxu0 0.0
    %480 = vmatprep.subr.mxu0 0.0
    %481 = vmatpush1.msra.mxu0 0.0
    %482 = vmatprep.subr.mxu0 0.0
    %483 = vmatpush1.msra.mxu0 0.0
    %484 = vmatprep.subr.mxu0 0.0
    %485 = vmatpush1.msra.mxu0 0.0
    %486 = vmatprep.subr.mxu0 0.0
    %487 = vmatpush1.msra.mxu0 0.0
    %488 = vmatprep.subr.mxu0 0.0
    %489 = vmatpush1.msra.mxu0 0.0
    %490 = vmatprep.subr.mxu0 0.0
    %491 = vmatpush1.msra.mxu0 0.0
    %492 = vmatprep.subr.mxu0 0.0
    %493 = vmatpush1.msra.mxu0 0.0
    %494 = vmatprep.subr.mxu0 0.0
    %495 = vmatpush1.msra.mxu0 0.0
    %496 = vmatprep.subr.mxu0 0.0
    %497 = vmatpush1.msra.mxu0 0.0
    %498 = vmatprep.subr.mxu0 0.0
    %499 = vmatpush1.msra.mxu0 0.0
    %500 = vmatprep.subr.mxu0 0.0
    %501 = vmatpush1.msra.mxu0 0.0
    %502 = vmatprep.subr.mxu0 0.0
    %503 = vmatpush1.msra.mxu0 0.0
    %504 = vmatprep.subr.mxu0 0.0
    %505 = vmatpush1.msra.mxu0 0.0
    %506 = vmatprep.subr.mxu0 0.0
    %507 = vmatpush1.msra.mxu0 0.0
    %508 = vmatprep.subr.mxu0 0.0
    %509 = vmatpush1.msra.mxu0 0.0
    %510 = vmatprep.subr.mxu0 0.0
    %511 = vmatpush1.msra.mxu0 0.0
    %512 = vmatprep.subr.mxu0 0.0
    %513 = vmatpush1.msra.mxu0 0.0
    %514 = vmatprep.subr.mxu0 0.0
    %515 = vmatpush1.msra.mxu0 0.0
    %516 = vmatprep.subr.mxu0 0.0
    %517 = vmatpush1.msra.mxu0 0.0
    %518 = vmatprep.subr.mxu0 0.0
    %519 = vmatpush1.msra.mxu0 0.0
    %520 = vmatprep.subr.mxu0 0.0
    %521 = vmatpush1.msra.mxu0 0.0
    %522 = vmatprep.subr.mxu0 0.0
    %523 = vmatpush1.msra.mxu0 0.0
    %524 = vmatprep.subr.mxu0 0.0
    %525 = vmatpush1.msra.mxu0 0.0
    %526 = vmatprep.subr.mxu0 0.0
    %527 = vmatpush1.msra.mxu0 0.0
    %528 = vmatprep.subr.mxu0 0.0
    %529 = vmatpush1.msra.mxu0 0.0
    %530 = vmatprep.subr.mxu0 0.0
    %531 = vmatpush1.msra.mxu0 0.0
    %532 = vmatprep.subr.mxu0 0.0
    %533 = vmatpush1.msra.mxu0 0.0
    %534 = vmatprep.subr.mxu0 0.0
    %535 = vmatpush1.msra.mxu0 0.0
    %536 = vmatprep.mubr.f32.mxu0 0.0
    %537 = vmatmul.mubr.f32.gmra.mrb[0].mxu0 %v468
    %v538 = vpop.f32.mrb[0].mxu0
    %v539 = vadd.f32 %v457, %v538
    %v540 = vpop.f32.mrb[0].mxu0
    %541 = vmatprep.mubr.f32.mxu0 0.0
    %542 = vmatmul.mubr.f32.gmra.mrb[0].mxu0 %v470
    %v543 = vpop.f32.mrb[0].mxu0
    %v544 = vadd.f32 %v459, %v543
    %v545 = vpop.f32.mrb[0].mxu0
    %546 = vdwg.mxu0
    %549 = vrot.lane.b32.xlu0 %v539, 79
    %v550 = vpop.permute.xlu0 %549
    %551 = vrot.lane.b32.xlu0 %v544, 79
    %v552 = vpop.permute.xlu0 %551
    %v555 = vsel %vm348, %v550, 0.0
    %v556 = vsel %vm348, %v552, 0.0
    %v557 = vsel %vm354, %v550, 0.0
    %v558 = vsel %vm354, %v552, 0.0
    %559 = vrot.lane.b32.xlu0 %v458, 88
    %v560 = vpop.permute.xlu0 %559
    %561 = vrot.lane.b32.xlu0 %v460, 88
    %v562 = vpop.permute.xlu0 %561
    %vm565 = vcmask 261120
    %v566 = vsel %vm565, %v458, 0
    %v568 = vsel %vm565, %v460, 0
    %570 = vmatprep.subr.mxu0 0.0
    %571 = vmatpush1.msra.mxu0 %v555
    %572 = vmatprep.subr.mxu0 0.0
    %573 = vmatpush1.msra.mxu0 %v556
    %574 = vmatprep.subr.mxu0 0.0
    %575 = vmatpush1.msra.mxu0 %v557
    %576 = vmatprep.subr.mxu0 0.0
    %577 = vmatpush1.msra.mxu0 %v558
    %578 = vmatprep.subr.mxu0 0.0
    %579 = vmatpush1.msra.mxu0 0.0
    %580 = vmatprep.subr.mxu0 0.0
    %581 = vmatpush1.msra.mxu0 0.0
    %582 = vmatprep.subr.mxu0 0.0
    %583 = vmatpush1.msra.mxu0 0.0
    %584 = vmatprep.subr.mxu0 0.0
    %585 = vmatpush1.msra.mxu0 0.0
    %586 = vmatprep.subr.mxu0 0.0
    %587 = vmatpush1.msra.mxu0 0.0
    %588 = vmatprep.subr.mxu0 0.0
    %589 = vmatpush1.msra.mxu0 0.0
    %590 = vmatprep.subr.mxu0 0.0
    %591 = vmatpush1.msra.mxu0 0.0
    %592 = vmatprep.subr.mxu0 0.0
    %593 = vmatpush1.msra.mxu0 0.0
    %594 = vmatprep.subr.mxu0 0.0
    %595 = vmatpush1.msra.mxu0 0.0
    %596 = vmatprep.subr.mxu0 0.0
    %597 = vmatpush1.msra.mxu0 0.0
    %598 = vmatprep.subr.mxu0 0.0
    %599 = vmatpush1.msra.mxu0 0.0
    %600 = vmatprep.subr.mxu0 0.0
    %601 = vmatpush1.msra.mxu0 0.0
    %602 = vmatprep.subr.mxu0 0.0
    %603 = vmatpush1.msra.mxu0 0.0
    %604 = vmatprep.subr.mxu0 0.0
    %605 = vmatpush1.msra.mxu0 0.0
    %606 = vmatprep.subr.mxu0 0.0
    %607 = vmatpush1.msra.mxu0 0.0
    %608 = vmatprep.subr.mxu0 0.0
    %609 = vmatpush1.msra.mxu0 0.0
    %610 = vmatprep.subr.mxu0 0.0
    %611 = vmatpush1.msra.mxu0 0.0
    %612 = vmatprep.subr.mxu0 0.0
    %613 = vmatpush1.msra.mxu0 0.0
    %614 = vmatprep.subr.mxu0 0.0
    %615 = vmatpush1.msra.mxu0 0.0
    %616 = vmatprep.subr.mxu0 0.0
    %617 = vmatpush1.msra.mxu0 0.0
    %618 = vmatprep.subr.mxu0 0.0
    %619 = vmatpush1.msra.mxu0 0.0
    %620 = vmatprep.subr.mxu0 0.0
    %621 = vmatpush1.msra.mxu0 0.0
    %622 = vmatprep.subr.mxu0 0.0
    %623 = vmatpush1.msra.mxu0 0.0
    %624 = vmatprep.subr.mxu0 0.0
    %625 = vmatpush1.msra.mxu0 0.0
    %626 = vmatprep.subr.mxu0 0.0
    %627 = vmatpush1.msra.mxu0 0.0
    %628 = vmatprep.subr.mxu0 0.0
    %629 = vmatpush1.msra.mxu0 0.0
    %630 = vmatprep.subr.mxu0 0.0
    %631 = vmatpush1.msra.mxu0 0.0
    %632 = vmatprep.subr.mxu0 0.0
    %633 = vmatpush1.msra.mxu0 0.0
    %634 = vmatprep.mubr.f32.mxu0 0.0
    %635 = vmatmul.mubr.f32.gmra.mrb[0].mxu0 %v566
    %v636 = vpop.f32.mrb[0].mxu0
    %v637 = vadd.f32 %v560, %v636
    %v638 = vpop.f32.mrb[0].mxu0
    %639 = vmatprep.mubr.f32.mxu0 0.0
    %640 = vmatmul.mubr.f32.gmra.mrb[0].mxu0 %v568
    %v641 = vpop.f32.mrb[0].mxu0
    %v642 = vadd.f32 %v562, %v641
    %v643 = vpop.f32.mrb[0].mxu0
    %644 = vdwg.mxu0
    %v645 = vxor.u32 %v637, 2147483648
    %v646 = vxor.u32 %v642, 2147483648
    %v647 = vmul.f32 %v645, 1.442695
    %v648 = vpow.pop %v647
    %v649 = vmul.f32 %v646, 1.442695
    %v650 = vpow.pop %v649
    %v651 = vadd.f32 %v648, 1.0
    %v652 = vadd.f32 %v650, 1.0
    %v653 = vrcp.pop %v651
    %v654 = vmul.f32 1.0, %v653
    %v655 = vrcp.pop %v652
    %v656 = vmul.f32 1.0, %v655
    %659 = vrot.lane.b32.xlu0 %v654, 127
    %v660 = vpop.permute.xlu0 %659
    %661 = vrot.lane.b32.xlu0 %v656, 127
    %v662 = vpop.permute.xlu0 %661
    %v665 = vmul.f32 %v654, %v660
    %v666 = vmul.f32 %v656, %v662
    %v667 = vsub.f32 %v665, 0.2
    %v668 = vsub.f32 %v666, 0.2
    %v669 = vmul.f32 %v667, 2.0
    %v670 = vmul.f32 %v668, 2.0
    %v671 = vxor.u32 %v669, 2147483648
    %v672 = vxor.u32 %v670, 2147483648
    %v673 = vmul.f32 %v671, 1.442695
    %v674 = vpow.pop %v673
    %v675 = vmul.f32 %v672, 1.442695
    %v676 = vpow.pop %v675
    %v677 = vadd.f32 %v674, 1.0
    %v678 = vadd.f32 %v676, 1.0
    %v679 = vrcp.pop %v677
    %v680 = vmul.f32 1.0, %v679
    %v681 = vrcp.pop %v678
    %v682 = vmul.f32 1.0, %v681
    %684 = vset.pattern.permute.xlu0 0
    %685 = vperm.xlu0 %684, %v680
    %v686 = vpop.permute.xlu0 %685
    %689 = vset.pattern.permute.xlu0 0
    %690 = vperm.xlu0 %689, %v682
    %v691 = vpop.permute.xlu0 %690
    %v693 = vmul.f32 %v539, %v686
    %v694 = vmul.f32 %v544, %v691
    %695 = vst [vmem:[%s4] sm:$0xff] %v693
    %696 = vst [vmem:[%s4 + $0x8] sm:$0xff] %v694
    // Predicated region
    $region22: #{fwd.1} parent=1 // pred_check
      _
    $region23: #{fwd.1} parent=1 // pred_check_branch
      %698 = sbr.rel (0) target = $region25
    $region24: #{fwd.1} parent=1 // pred_region
      _
    $region25: #{fwd.1} parent=1 // pred_fallthru
      _
    // Predicated region
    $region26: #{fwd.1} parent=1 // pred_check
      _
    $region27: #{fwd.1} parent=1 // pred_check_branch
      %700 = sbr.rel (0) target = $region29
    $region28: #{fwd.1} parent=1 // pred_region
      _
    $region29: #{fwd.1} parent=1 // pred_fallthru
      _
    %701 = vsyncpa [#allocation3], 1

</llo_original>
